<compile_context>
chip_gen: v6e
topology: v6e:2x2x1
jax: 0.10.0
libtpu: 0.0.40
codegen_flags: <defaults>
</compile_context>

<pallas_src>
import jax
import jax.numpy as jnp
from jax import lax
from jax.experimental import pallas as pl
from jax.experimental.pallas import tpu as pltpu


# ----------------------------- Pallas kernel -------------------------------

def _gau_kernel(xf_ref, bw_ref, ah_ref, ywf_ref,
                scale_ref, bias_ref, gate_ref, o_ref):
    """One (batch image, output-row tile) grid step.  Lane axis = W*Cout.

    xf_ref:    (1, H+2, (W+2)*Cin)   zero-padded input image, lane-flattened
                                     (block index constant over row tiles)
    bw_ref:    (3, (W+2)*Cin, W*Cout) banded 3x3-conv weights, one per dy
    ah_ref:    (TH, h)               H-direction bilinear interp matrix rows
    ywf_ref:   (1, h, W*Cout)        W-interpolated low-res feature (flattened)
    scale_ref: (1, 1, W*Cout)        folded BN scale, tiled over W
    bias_ref:  (1, 1, W*Cout)        folded BN bias (incl. conv bias), tiled
    gate_ref:  (1, 1, W*Cout)        sigmoid gate for this image, tiled
    o_ref:     (1, TH, W*Cout)       output row tile (lane-dense)
    """
    TH = o_ref.shape[1]
    r0 = pl.multiple_of(pl.program_id(1) * TH, TH)

    # ---- conv2 branch: 3x3 conv (pad=1) as 3 banded MXU dots ---------------
    # Output rows [r0, r0+TH) need padded input rows [r0, r0+TH+2).
    xrows = xf_ref[0, pl.ds(r0, TH + 2), :]              # (TH+2, (W+2)*Cin)
    acc = jnp.zeros(o_ref.shape[1:], jnp.float32)        # (TH, W*Cout)
    for dy in range(3):
        acc = acc + jnp.dot(xrows[dy:dy + TH], bw_ref[dy],
                            preferred_element_type=jnp.float32)

    # folded BN + ReLU + gate (all lane-dense VPU ops)
    z = jnp.maximum(acc * scale_ref[0] + bias_ref[0], 0.0) * gate_ref[0]

    # ---- fused H-direction bilinear upsample (one small MXU dot) -----------
    yup = jnp.dot(ah_ref[...], ywf_ref[0], preferred_element_type=jnp.float32)

    o_ref[0] = (yup + z).astype(o_ref.dtype)


# ------------------------------ JAX glue ------------------------------------

def _interp_matrix(out_size, in_size, dtype=jnp.float32):
    """Row-interpolation matrix for bilinear interp with align_corners=True."""
    if out_size == 1 or in_size == 1:
        src = jnp.zeros((out_size,), dtype)
    else:
        src = jnp.arange(out_size, dtype=dtype) * ((in_size - 1) / (out_size - 1))
    i0 = jnp.clip(jnp.floor(src).astype(jnp.int32), 0, in_size - 1)
    i1 = jnp.clip(i0 + 1, 0, in_size - 1)
    frac = src - i0.astype(dtype)
    A = jnp.zeros((out_size, in_size), dtype)
    r = jnp.arange(out_size)
    A = A.at[r, i0].add(1.0 - frac)
    A = A.at[r, i1].add(frac)
    return A


def _pick_row_tile(H):
    """Largest multiple-of-8 divisor of H (<=256); fall back to H."""
    best = None
    for th in range(8, min(H, 256) + 1, 8):
        if H % th == 0:
            best = th
    return best if best is not None else H


def _banded_conv_weights(w2, W):
    """Build BW[dy, xp*Cin+ci, x*Cout+co] = w2[dy, dx, ci, co] for xp == x+dx."""
    kh, kw, Cin, Cout = w2.shape
    assert kh == 3 and kw == 3
    # E[dx, xp, x] = (xp == x + dx)
    E = (jnp.arange(W + 2)[None, :, None]
         == (jnp.arange(W)[None, None, :]
             + jnp.arange(3)[:, None, None])).astype(jnp.float32)
    bw = jnp.einsum('dpx,kdio->kpixo', E, w2)            # (3, W+2, Cin, W, Cout)
    return bw.reshape(3, (W + 2) * Cin, W * Cout)


def gau_forward(x_nchw, y_nchw, params, *, eps=1e-5):
    """GAUModule.forward. x: (N, in_ch, H, W), y: (N, out_ch, h, w) -> (N, out_ch, H, W)."""
    # NCHW -> NHWC at the module boundary (interface requirement).
    x = jnp.transpose(x_nchw, (0, 2, 3, 1)).astype(jnp.float32)
    y = jnp.transpose(y_nchw, (0, 2, 3, 1)).astype(jnp.float32)
    N, H, W, Cin = x.shape
    _, h, w, Cout = y.shape
    WC = W * Cout

    # Fold conv biases + inference-mode BN into per-channel scale/bias.
    s2 = params['gamma2'] / jnp.sqrt(params['var2'] + eps)
    b2 = params['beta2'] + (params['b2'] - params['mean2']) * s2
    s1 = params['gamma1'] / jnp.sqrt(params['var1'] + eps)
    b1 = params['beta1'] + (params['b1'] - params['mean1']) * s1

    # conv1 branch (gate): GAP + 1x1 conv + BN + sigmoid — a few-KB matmul,
    # done in plain JAX (no extra custom call / HBM round trip).
    pooled = jnp.mean(y, axis=(1, 2))                              # (N, Cout)
    gate = jax.nn.sigmoid(pooled @ params['w1'].T * s1 + b1)       # (N, Cout)

    # Bilinear upsample (align_corners=True), separable:
    #  * W direction here on the small low-res map (h x W x C, cheap),
    #  * H direction (the big expansion) fused into the kernel as a matmul.
    A_w = _interp_matrix(W, w)
    A_h = _interp_matrix(H, h)                                     # (H, h)
    y_wup = jnp.einsum('Ww,nhwc->nhWc', A_w, y)                    # (N, h, W, Cout)
    ywf = y_wup.reshape(N, h, WC)

    # Banded 3x3 conv weights -> three (K=(W+2)*Cin, N=W*Cout) MXU operands.
    bw = _banded_conv_weights(params['w2'], W)                     # (3, (W+2)*Cin, WC)

    # Zero-pad x for the 3x3 halo and lane-flatten.  Constant block index
    # along the row-tile axis -> DMA'd to VMEM once per batch image.
    x_pad = jnp.pad(x, ((0, 0), (1, 1), (1, 1), (0, 0)))
    xf = x_pad.reshape(N, H + 2, (W + 2) * Cin)

    # Per-channel scale/bias/gate tiled to the lane-dense x*Cout+co layout.
    scale_f = jnp.tile(s2, W).reshape(1, 1, WC)
    bias_f = jnp.tile(b2, W).reshape(1, 1, WC)
    gate_f = jnp.tile(gate, (1, W)).reshape(N, 1, WC)

    TH = _pick_row_tile(H)
    grid = (N, H // TH)

    flops = N * H * (3 * 2 * (W + 2) * Cin * WC + 2 * h * WC + 5 * WC)
    bytes_accessed = 4 * (xf.size + bw.size + ywf.size + A_h.size
                          + N * H * WC + N * WC + 2 * WC)

    out_flat = pl.pallas_call(
        _gau_kernel,
        out_shape=jax.ShapeDtypeStruct((N, H, WC), jnp.float32),
        grid=grid,
        in_specs=[
            pl.BlockSpec((1, H + 2, (W + 2) * Cin), lambda n, i: (n, 0, 0)),  # xf
            pl.BlockSpec((3, (W + 2) * Cin, WC), lambda n, i: (0, 0, 0)),     # bw
            pl.BlockSpec((TH, h), lambda n, i: (i, 0)),                       # A_h rows
            pl.BlockSpec((1, h, WC), lambda n, i: (n, 0, 0)),                 # ywf
            pl.BlockSpec((1, 1, WC), lambda n, i: (0, 0, 0)),                 # scale
            pl.BlockSpec((1, 1, WC), lambda n, i: (0, 0, 0)),                 # bias
            pl.BlockSpec((1, 1, WC), lambda n, i: (n, 0, 0)),                 # gate
        ],
        out_specs=pl.BlockSpec((1, TH, WC), lambda n, i: (n, i, 0)),
        compiler_params=pltpu.CompilerParams(
            dimension_semantics=("parallel", "parallel"),
            vmem_limit_bytes=32 * 1024 * 1024),
        cost_estimate=pl.CostEstimate(
            flops=int(flops), transcendentals=0,
            bytes_accessed=int(bytes_accessed)),
    )(xf, bw, A_h, ywf, scale_f, bias_f, gate_f)

    out_nhwc = out_flat.reshape(N, H, W, Cout)
    return jnp.transpose(out_nhwc, (0, 3, 1, 2))                   # back to NCHW


# --------------------------- pure-JAX reference ------------------------------

def gau_reference(x, y, params, *, eps=1e-5):
    w_oihw = jnp.transpose(params['w2'], (3, 2, 0, 1))             # (O, I, kh, kw)
    conv = lax.conv_general_dilated(
        x, w_oihw, window_strides=(1, 1), padding=((1, 1), (1, 1)),
        dimension_numbers=('NCHW', 'OIHW', 'NCHW'))
    conv = conv + params['b2'][None, :, None, None]
    bn = ((conv - params['mean2'][None, :, None, None])
          / jnp.sqrt(params['var2'][None, :, None, None] + eps)
          * params['gamma2'][None, :, None, None]
          + params['beta2'][None, :, None, None])
    xr = jnp.maximum(bn, 0.0)

    pooled = jnp.mean(y, axis=(2, 3))                              # (N, C)
    t = pooled @ params['w1'].T + params['b1']
    t = ((t - params['mean1']) / jnp.sqrt(params['var1'] + eps)
         * params['gamma1'] + params['beta1'])
    gate = jax.nn.sigmoid(t)[:, :, None, None]

    A_h = _interp_matrix(x.shape[2], y.shape[2])
    A_w = _interp_matrix(x.shape[3], y.shape[3])
    y_up = jnp.einsum('Hh,nchw,Ww->ncHW', A_h, y, A_w)
    return y_up + xr * gate


# --------------------------------- main --------------------------------------

if __name__ == "__main__":
    in_ch, out_ch = 4, 8
    N, H, W = 2, 16, 16
    h, w = 8, 8

    key = jax.random.PRNGKey(0)
    ks = jax.random.split(key, 12)

    params = {
        # conv2: 3x3, in_ch -> out_ch (stored (kh, kw, Cin, Cout))
        'w2': jax.random.normal(ks[0], (3, 3, in_ch, out_ch), jnp.float32) * 0.1,
        'b2': jax.random.normal(ks[1], (out_ch,), jnp.float32) * 0.1,
        'gamma2': 1.0 + 0.1 * jax.random.normal(ks[2], (out_ch,), jnp.float32),
        'beta2': 0.1 * jax.random.normal(ks[3], (out_ch,), jnp.float32),
        'mean2': 0.1 * jax.random.normal(ks[4], (out_ch,), jnp.float32),
        'var2': 0.5 + jnp.abs(jax.random.normal(ks[5], (out_ch,), jnp.float32)),
        # conv1: 1x1, out_ch -> out_ch (stored torch-style (O, I))
        'w1': jax.random.normal(ks[6], (out_ch, out_ch), jnp.float32) * 0.1,
        'b1': jax.random.normal(ks[7], (out_ch,), jnp.float32) * 0.1,
        'gamma1': 1.0 + 0.1 * jax.random.normal(ks[8], (out_ch,), jnp.float32),
        'beta1': 0.1 * jax.random.normal(ks[9], (out_ch,), jnp.float32),
        'mean1': 0.1 * jax.random.normal(ks[10], (out_ch,), jnp.float32),
        'var1': 0.5 + jnp.abs(jax.random.normal(ks[11], (out_ch,), jnp.float32)),
    }

    kx, ky = jax.random.split(jax.random.PRNGKey(1))
    x = jax.random.normal(kx, (N, in_ch, H, W), jnp.float32)
    y = jax.random.normal(ky, (N, out_ch, h, w), jnp.float32)

    out = jax.block_until_ready(gau_forward(x, y, params))
    ref = jax.block_until_ready(gau_reference(x, y, params))

    assert out.shape == (N, out_ch, H, W), out.shape
    assert jnp.allclose(out, ref, atol=1e-4, rtol=1e-4), \
        float(jnp.max(jnp.abs(out - ref)))
    print("KERNEL_OK")
</pallas_src>

<mosaic_0001>
module attributes {stable_mosaic.version = 11 : i64} {
  func.func @_gau_kernel(%arg0: i32, %arg1: i32, %arg2: memref<1x18x72xf32, #tpu.memory_space<vmem>>, %arg3: memref<3x72x128xf32, #tpu.memory_space<vmem>>, %arg4: memref<16x8xf32, #tpu.memory_space<vmem>>, %arg5: memref<1x8x128xf32, #tpu.memory_space<vmem>>, %arg6: memref<1x1x128xf32, #tpu.memory_space<vmem>>, %arg7: memref<1x1x128xf32, #tpu.memory_space<vmem>>, %arg8: memref<1x1x128xf32, #tpu.memory_space<vmem>>, %arg9: memref<1x16x128xf32, #tpu.memory_space<vmem>>) attributes {dimension_semantics = [#tpu.dimension_semantics<parallel>, #tpu.dimension_semantics<parallel>], iteration_bounds = array<i64: 2, 1>, scalar_prefetch = 0 : i64, scratch_operands = 0 : i64, tpu.core_type = #tpu.core_type<tc>, window_params = [{transform_indices = @transform_0, window_bounds = array<i64: 1, 18, 72>}, {pipeline_mode = #tpu.pipeline_mode<synchronous>, transform_indices = @transform_1, window_bounds = array<i64: 3, 72, 128>}, {transform_indices = @transform_2, window_bounds = array<i64: 16, 8>}, {transform_indices = @transform_3, window_bounds = array<i64: 1, 8, 128>}, {pipeline_mode = #tpu.pipeline_mode<synchronous>, transform_indices = @transform_4, window_bounds = array<i64: 1, 1, 128>}, {pipeline_mode = #tpu.pipeline_mode<synchronous>, transform_indices = @transform_5, window_bounds = array<i64: 1, 1, 128>}, {transform_indices = @transform_6, window_bounds = array<i64: 1, 1, 128>}, {transform_indices = @transform_7, window_bounds = array<i64: 1, 16, 128>}]} {
    %c16_i32 = arith.constant 16 : i32
    %0 = arith.muli %arg1, %c16_i32 : i32
    %1 = tpu.assume_multiple %0, 16 : i32
    %c0 = arith.constant 0 : index
    %2 = arith.index_cast %1 : i32 to index
    %c0_0 = arith.constant 0 : index
    %3 = vector.load %arg2[%c0, %2, %c0_0] : memref<1x18x72xf32, #tpu.memory_space<vmem>>, vector<1x18x72xf32>
    %4 = vector.shape_cast %3 : vector<1x18x72xf32> to vector<18x72xf32>
    %cst = arith.constant 0.000000e+00 : f32
    %5 = vector.broadcast %cst : f32 to vector<16x128xf32>
    %6 = vector.extract_strided_slice %4 {offsets = [0, 0], sizes = [16, 72], strides = [1, 1]} : vector<18x72xf32> to vector<16x72xf32>
    %c0_1 = arith.constant 0 : index
    %c0_2 = arith.constant 0 : index
    %c0_3 = arith.constant 0 : index
    %7 = vector.load %arg3[%c0_1, %c0_2, %c0_3] : memref<3x72x128xf32, #tpu.memory_space<vmem>>, vector<1x72x128xf32>
    %8 = vector.shape_cast %7 : vector<1x72x128xf32> to vector<72x128xf32>
    %cst_4 = arith.constant dense<0.000000e+00> : vector<16x128xf32>
    %9 = tpu.matmul %6, %8, %cst_4 {dimension_numbers = #tpu.dot_dimension_numbers<[1], [0], [0], [1], [0, 0, 1, 1], [], []>} : vector<16x72xf32>, vector<72x128xf32>, vector<16x128xf32> -> vector<16x128xf32>
    %10 = arith.addf %5, %9 : vector<16x128xf32>
    %11 = vector.extract_strided_slice %4 {offsets = [1, 0], sizes = [16, 72], strides = [1, 1]} : vector<18x72xf32> to vector<16x72xf32>
    %c1 = arith.constant 1 : index
    %c0_5 = arith.constant 0 : index
    %c0_6 = arith.constant 0 : index
    %12 = vector.load %arg3[%c1, %c0_5, %c0_6] : memref<3x72x128xf32, #tpu.memory_space<vmem>>, vector<1x72x128xf32>
    %13 = vector.shape_cast %12 : vector<1x72x128xf32> to vector<72x128xf32>
    %cst_7 = arith.constant dense<0.000000e+00> : vector<16x128xf32>
    %14 = tpu.matmul %11, %13, %cst_7 {dimension_numbers = #tpu.dot_dimension_numbers<[1], [0], [0], [1], [0, 0, 1, 1], [], []>} : vector<16x72xf32>, vector<72x128xf32>, vector<16x128xf32> -> vector<16x128xf32>
    %15 = arith.addf %10, %14 : vector<16x128xf32>
    %16 = vector.extract_strided_slice %4 {offsets = [2, 0], sizes = [16, 72], strides = [1, 1]} : vector<18x72xf32> to vector<16x72xf32>
    %c2 = arith.constant 2 : index
    %c0_8 = arith.constant 0 : index
    %c0_9 = arith.constant 0 : index
    %17 = vector.load %arg3[%c2, %c0_8, %c0_9] : memref<3x72x128xf32, #tpu.memory_space<vmem>>, vector<1x72x128xf32>
    %18 = vector.shape_cast %17 : vector<1x72x128xf32> to vector<72x128xf32>
    %cst_10 = arith.constant dense<0.000000e+00> : vector<16x128xf32>
    %19 = tpu.matmul %16, %18, %cst_10 {dimension_numbers = #tpu.dot_dimension_numbers<[1], [0], [0], [1], [0, 0, 1, 1], [], []>} : vector<16x72xf32>, vector<72x128xf32>, vector<16x128xf32> -> vector<16x128xf32>
    %20 = arith.addf %15, %19 : vector<16x128xf32>
    %c0_11 = arith.constant 0 : index
    %c0_12 = arith.constant 0 : index
    %c0_13 = arith.constant 0 : index
    %21 = vector.load %arg6[%c0_11, %c0_12, %c0_13] : memref<1x1x128xf32, #tpu.memory_space<vmem>>, vector<1x1x128xf32>
    %22 = vector.shape_cast %21 : vector<1x1x128xf32> to vector<1x128xf32>
    %23 = vector.broadcast %22 : vector<1x128xf32> to vector<16x128xf32>
    %24 = arith.mulf %20, %23 : vector<16x128xf32>
    %c0_14 = arith.constant 0 : index
    %c0_15 = arith.constant 0 : index
    %c0_16 = arith.constant 0 : index
    %25 = vector.load %arg7[%c0_14, %c0_15, %c0_16] : memref<1x1x128xf32, #tpu.memory_space<vmem>>, vector<1x1x128xf32>
    %26 = vector.shape_cast %25 : vector<1x1x128xf32> to vector<1x128xf32>
    %27 = vector.broadcast %26 : vector<1x128xf32> to vector<16x128xf32>
    %28 = arith.addf %24, %27 : vector<16x128xf32>
    %cst_17 = arith.constant 0.000000e+00 : f32
    %29 = vector.broadcast %cst_17 : f32 to vector<16x128xf32>
    %30 = arith.maximumf %28, %29 : vector<16x128xf32>
    %c0_18 = arith.constant 0 : index
    %c0_19 = arith.constant 0 : index
    %c0_20 = arith.constant 0 : index
    %31 = vector.load %arg8[%c0_18, %c0_19, %c0_20] : memref<1x1x128xf32, #tpu.memory_space<vmem>>, vector<1x1x128xf32>
    %32 = vector.shape_cast %31 : vector<1x1x128xf32> to vector<1x128xf32>
    %33 = vector.broadcast %32 : vector<1x128xf32> to vector<16x128xf32>
    %34 = arith.mulf %30, %33 : vector<16x128xf32>
    %c0_21 = arith.constant 0 : index
    %c0_22 = arith.constant 0 : index
    %35 = vector.load %arg4[%c0_21, %c0_22] : memref<16x8xf32, #tpu.memory_space<vmem>>, vector<16x8xf32>
    %c0_23 = arith.constant 0 : index
    %c0_24 = arith.constant 0 : index
    %c0_25 = arith.constant 0 : index
    %36 = vector.load %arg5[%c0_23, %c0_24, %c0_25] : memref<1x8x128xf32, #tpu.memory_space<vmem>>, vector<1x8x128xf32>
    %37 = vector.shape_cast %36 : vector<1x8x128xf32> to vector<8x128xf32>
    %cst_26 = arith.constant dense<0.000000e+00> : vector<16x128xf32>
    %38 = tpu.matmul %35, %37, %cst_26 {dimension_numbers = #tpu.dot_dimension_numbers<[1], [0], [0], [1], [0, 0, 1, 1], [], []>} : vector<16x8xf32>, vector<8x128xf32>, vector<16x128xf32> -> vector<16x128xf32>
    %39 = arith.addf %38, %34 : vector<16x128xf32>
    %c0_27 = arith.constant 0 : index
    %c0_28 = arith.constant 0 : index
    %c0_29 = arith.constant 0 : index
    %40 = vector.load %arg9[%c0_27, %c0_28, %c0_29] : memref<1x16x128xf32, #tpu.memory_space<vmem>>, vector<1x16x128xf32>
    %41 = vector.shape_cast %40 : vector<1x16x128xf32> to vector<16x128xf32>
    %42 = vector.shape_cast %39 : vector<16x128xf32> to vector<1x16x128xf32>
    tpu.vector_store %arg9[%c0_27, %c0_28, %c0_29], %42 {strides = array<i32>} : memref<1x16x128xf32, #tpu.memory_space<vmem>>, vector<1x16x128xf32>,
    return
  }
  func.func @transform_0(%arg0: i32, %arg1: i32) -> (i32, i32, i32) {
    %c0_i32 = arith.constant 0 : i32
    %c0_i32_0 = arith.constant 0 : i32
    %c0_i32_1 = arith.constant 0 : i32
    return %arg0, %c0_i32, %c0_i32_0 : i32, i32, i32
  }
  func.func @transform_1(%arg0: i32, %arg1: i32) -> (i32, i32, i32) {
    %c0_i32 = arith.constant 0 : i32
    %c0_i32_0 = arith.constant 0 : i32
    %c0_i32_1 = arith.constant 0 : i32
    %c0_i32_2 = arith.constant 0 : i32
    return %c0_i32, %c0_i32_0, %c0_i32_1 : i32, i32, i32
  }
  func.func @transform_2(%arg0: i32, %arg1: i32) -> (i32, i32) {
    %c0_i32 = arith.constant 0 : i32
    %c0_i32_0 = arith.constant 0 : i32
    return %arg1, %c0_i32 : i32, i32
  }
  func.func @transform_3(%arg0: i32, %arg1: i32) -> (i32, i32, i32) {
    %c0_i32 = arith.constant 0 : i32
    %c0_i32_0 = arith.constant 0 : i32
    %c0_i32_1 = arith.constant 0 : i32
    return %arg0, %c0_i32, %c0_i32_0 : i32, i32, i32
  }
  func.func @transform_4(%arg0: i32, %arg1: i32) -> (i32, i32, i32) {
    %c0_i32 = arith.constant 0 : i32
    %c0_i32_0 = arith.constant 0 : i32
    %c0_i32_1 = arith.constant 0 : i32
    %c0_i32_2 = arith.constant 0 : i32
    return %c0_i32, %c0_i32_0, %c0_i32_1 : i32, i32, i32
  }
  func.func @transform_5(%arg0: i32, %arg1: i32) -> (i32, i32, i32) {
    %c0_i32 = arith.constant 0 : i32
    %c0_i32_0 = arith.constant 0 : i32
    %c0_i32_1 = arith.constant 0 : i32
    %c0_i32_2 = arith.constant 0 : i32
    return %c0_i32, %c0_i32_0, %c0_i32_1 : i32, i32, i32
  }
  func.func @transform_6(%arg0: i32, %arg1: i32) -> (i32, i32, i32) {
    %c0_i32 = arith.constant 0 : i32
    %c0_i32_0 = arith.constant 0 : i32
    %c0_i32_1 = arith.constant 0 : i32
    return %arg0, %c0_i32, %c0_i32_0 : i32, i32, i32
  }
  func.func @transform_7(%arg0: i32, %arg1: i32) -> (i32, i32, i32) {
    %c0_i32 = arith.constant 0 : i32
    %c0_i32_0 = arith.constant 0 : i32
    return %arg0, %arg1, %c0_i32 : i32, i32, i32
  }
}

</mosaic_0001>

<llo_original>
// kernel: tpu_custom_call.1
$region0: #{tpu_custom_call.1}
  #allocation0 [shape = 'u32[]', space=smem, size = 0x4, offset = 0x4, fixed_abs, tag = 'smem constant byte address 0x4 - core index']
  #allocation1 [shape = 'u32[144,128]{1,0:T(1,128)}', space=vmem, size = 0x12000, scoped, tag = 'internal scratch']
  %s0 = inlined_call_operand.vmem [shape: f32[2,18,72], index: 0, kind: input, shape index: {}]
  %s1 = inlined_call_operand.hbm [shape: f32[3,72,128], index: 1, kind: input, shape index: {}]
  %s2 = inlined_call_operand.vmem [shape: f32[16,8], index: 2, kind: input, shape index: {}]
  %s3 = inlined_call_operand.vmem [shape: f32[2,8,128], index: 3, kind: input, shape index: {}]
  %s4 = inlined_call_operand.vmem [shape: f32[1,1,128], index: 4, kind: input, shape index: {}]
  %s5 = inlined_call_operand.vmem [shape: f32[1,1,128], index: 5, kind: input, shape index: {}]
  %s6 = inlined_call_operand.vmem [shape: f32[2,1,128], index: 6, kind: input, shape index: {}]
  %s7 = inlined_call_operand.hbm [shape: f32[2,16,128], index: 7, kind: output, shape index: {}]
  %s8 = sld [smem:[#allocation0]]
  $region65: #{tpu_custom_call.1} parent=0
    _
  %s10 = ssub.s32 1, %s8
  %s11 = scalar_select 0, %s10, %s8
  $region1: #{tpu_custom_call.1} parent=0
    #allocation2 [shape = 'u8[110592]{0}', space=vmem, size = 0x1b000, scoped, tag = 'input window, operand 1, single buffered']
    #allocation3 [shape = 's32[2]{0}', space=sflag, size = 0x8, scoped, tag = 'scoped memory for tpu_custom_call.1']
    #allocation4 [shape = 's32[2]{0}', space=sflag, size = 0x8, scoped, tag = 'scoped memory for tpu_custom_call.1']
    #allocation5 [shape = 'u8[16384]{0}', space=vmem, size = 0x4000, scoped, tag = 'output window, operand 0']
    %12 = vsyncpa [#allocation3], 0
    %13 = vsyncpa [#allocation4], 0
    %s14 = scalar_lea.sflag [#allocation4], 1
    %15 = vsyncpa %s14, 0
    loop: start=0, step=1, limit=4
    $region2: #{tpu_custom_call.1} parent=1 // loop_pre_header
      _
    $region3: #{tpu_custom_call.1} parent=1 // loop_header
      %s17 = sphi 0, %s21
      %p18 = scmp.ge.s32.totalorder %s17, 4
      %s24 = sphi 0, %s36
      %s25 = sphi 0, %s32
      %s26 = sphi 0, %s24
      %s27 = sphi 0, %s25
      %s28 = sphi 0, %s26
      %s29 = sphi 0, %s27
      %s39 = sphi 0, %s41
      %s42 = sphi 0, %s39
      %s43 = sphi 0, %s42
      %s59 = sphi 0, %s43
      %s63 = sphi 0, %s63
      %s65 = sphi 0, %s63
      %s66 = sphi 0, %s65
      %s80 = sphi 0, %s66
      %s86 = sphi 0, %s88
      %s89 = sphi 0, %s86
      %s90 = sphi 0, %s89
      %s106 = sphi 0, %s90
      %s112 = sphi 0, %s114
      %s115 = sphi 0, %s112
      %s116 = sphi 0, %s115
      %s132 = sphi 0, %s116
      %s136 = sphi 0, %s136
      %s138 = sphi 0, %s136
      %s139 = sphi 0, %s138
      %s153 = sphi 0, %s139
      %s157 = sphi 0, %s157
      %s159 = sphi 0, %s157
      %s160 = sphi 0, %s159
      %s174 = sphi 0, %s160
      %s180 = sphi 0, %s182
      %s183 = sphi 0, %s180
      %s184 = sphi 0, %s183
      %s200 = sphi 0, %s184
      %s208 = sphi 0, %s210
      %s211 = sphi 0, %s208
      %s212 = sphi 0, %s211
      %s228 = sphi 0, %s212
    $region4: #{tpu_custom_call.1} parent=1 // loop_header_branch
      %20 = sbr.rel (%p18) target = $region8
    $region5: #{tpu_custom_call.1} parent=1 // loop_body
      %s22 = ssub.s32 %s17, 1
      %s23 = ssub.s32 %s17, 2
      %s30 = sadd.s32 1, %s25
      %p31 = scmp.ge.s32.totalorder %s30, 1
      %s32 = scalar_select %p31, 0, %s30
      %s33 = sadd.s32 1, %s24
      %s34 = scalar_select %p31, %s33, %s24
      %p35 = scmp.ge.s32.totalorder %s34, 2
      %s36 = scalar_select %p35, 0, %s34
      %s37 = ssub.s32 %s24, %s36
      %p38 = scmp.eq.s32.totalorder %s37, 0
      %s40 = sadd.s32 %s39, 1
      %s41 = scalar_select %p38, %s39, %s40
      %p44 = pneg %p38
      %p45 = scmp.eq.s32.totalorder %s17, 1
      %p46 = por %p44, %p45
      %p47 = scmp.ne.s32.totalorder %s39, %s42
      %p48 = scmp.eq.s32.totalorder %s17, 0
      %p49 = por %p47, %p48
      %p50 = scmp.ne.s32.totalorder %s39, %s42
      %p51 = scmp.eq.s32.totalorder %s22, 1
      %p52 = por %p50, %p51
      %p53 = scmp.ne.s32.totalorder %s42, %s43
      %p54 = scmp.eq.s32.totalorder %s22, 0
      %p55 = por %p53, %p54
      %p56 = scmp.ne.s32.totalorder %s42, %s43
      %p57 = scmp.eq.s32.totalorder %s23, 1
      %p58 = por %p56, %p57
      %p60 = scmp.ne.s32.totalorder %s43, %s59
      %p61 = scmp.eq.s32.totalorder %s23, 0
      %p62 = por %p60, %p61
      %s64 = sadd.s32 %s63, 1
      %p67 = scmp.eq.s32.totalorder %s17, 1
      %p68 = scmp.ne.s32.totalorder %s63, %s65
      %p69 = scmp.eq.s32.totalorder %s17, 0
      %p70 = por %p68, %p69
      %p71 = scmp.ne.s32.totalorder %s63, %s65
      %p72 = scmp.eq.s32.totalorder %s22, 1
      %p73 = por %p71, %p72
      %p74 = scmp.ne.s32.totalorder %s65, %s66
      %p75 = scmp.eq.s32.totalorder %s22, 0
      %p76 = por %p74, %p75
      %p77 = scmp.ne.s32.totalorder %s65, %s66
      %p78 = scmp.eq.s32.totalorder %s23, 1
      %p79 = por %p77, %p78
      %p81 = scmp.ne.s32.totalorder %s66, %s80
      %p82 = scmp.eq.s32.totalorder %s23, 0
      %p83 = por %p81, %p82
      %s84 = ssub.s32 %s25, %s32
      %p85 = scmp.eq.s32.totalorder %s84, 0
      %s87 = sadd.s32 %s86, 1
      %s88 = scalar_select %p85, %s86, %s87
      %p91 = pneg %p85
      %p92 = scmp.eq.s32.totalorder %s17, 1
      %p93 = por %p91, %p92
      %p94 = scmp.ne.s32.totalorder %s86, %s89
      %p95 = scmp.eq.s32.totalorder %s17, 0
      %p96 = por %p94, %p95
      %p97 = scmp.ne.s32.totalorder %s86, %s89
      %p98 = scmp.eq.s32.totalorder %s22, 1
      %p99 = por %p97, %p98
      %p100 = scmp.ne.s32.totalorder %s89, %s90
      %p101 = scmp.eq.s32.totalorder %s22, 0
      %p102 = por %p100, %p101
      %p103 = scmp.ne.s32.totalorder %s89, %s90
      %p104 = scmp.eq.s32.totalorder %s23, 1
      %p105 = por %p103, %p104
      %p107 = scmp.ne.s32.totalorder %s90, %s106
      %p108 = scmp.eq.s32.totalorder %s23, 0
      %p109 = por %p107, %p108
      %s110 = ssub.s32 %s24, %s36
      %p111 = scmp.eq.s32.totalorder %s110, 0
      %s113 = sadd.s32 %s112, 1
      %s114 = scalar_select %p111, %s112, %s113
      %p117 = pneg %p111
      %p118 = scmp.eq.s32.totalorder %s17, 1
      %p119 = por %p117, %p118
      %p120 = scmp.ne.s32.totalorder %s112, %s115
      %p121 = scmp.eq.s32.totalorder %s17, 0
      %p122 = por %p120, %p121
      %p123 = scmp.ne.s32.totalorder %s112, %s115
      %p124 = scmp.eq.s32.totalorder %s22, 1
      %p125 = por %p123, %p124
      %p126 = scmp.ne.s32.totalorder %s115, %s116
      %p127 = scmp.eq.s32.totalorder %s22, 0
      %p128 = por %p126, %p127
      %p129 = scmp.ne.s32.totalorder %s115, %s116
      %p130 = scmp.eq.s32.totalorder %s23, 1
      %p131 = por %p129, %p130
      %p133 = scmp.ne.s32.totalorder %s116, %s132
      %p134 = scmp.eq.s32.totalorder %s23, 0
      %p135 = por %p133, %p134
      %s137 = sadd.s32 %s136, 1
      %p140 = scmp.eq.s32.totalorder %s17, 1
      %p141 = scmp.ne.s32.totalorder %s136, %s138
      %p142 = scmp.eq.s32.totalorder %s17, 0
      %p143 = por %p141, %p142
      %p144 = scmp.ne.s32.totalorder %s136, %s138
      %p145 = scmp.eq.s32.totalorder %s22, 1
      %p146 = por %p144, %p145
      %p147 = scmp.ne.s32.totalorder %s138, %s139
      %p148 = scmp.eq.s32.totalorder %s22, 0
      %p149 = por %p147, %p148
      %p150 = scmp.ne.s32.totalorder %s138, %s139
      %p151 = scmp.eq.s32.totalorder %s23, 1
      %p152 = por %p150, %p151
      %p154 = scmp.ne.s32.totalorder %s139, %s153
      %p155 = scmp.eq.s32.totalorder %s23, 0
      %p156 = por %p154, %p155
      %s158 = sadd.s32 %s157, 1
      %p161 = scmp.eq.s32.totalorder %s17, 1
      %p162 = scmp.ne.s32.totalorder %s157, %s159
      %p163 = scmp.eq.s32.totalorder %s17, 0
      %p164 = por %p162, %p163
      %p165 = scmp.ne.s32.totalorder %s157, %s159
      %p166 = scmp.eq.s32.totalorder %s22, 1
      %p167 = por %p165, %p166
      %p168 = scmp.ne.s32.totalorder %s159, %s160
      %p169 = scmp.eq.s32.totalorder %s22, 0
      %p170 = por %p168, %p169
      %p171 = scmp.ne.s32.totalorder %s159, %s160
      %p172 = scmp.eq.s32.totalorder %s23, 1
      %p173 = por %p171, %p172
      %p175 = scmp.ne.s32.totalorder %s160, %s174
      %p176 = scmp.eq.s32.totalorder %s23, 0
      %p177 = por %p175, %p176
      %s178 = ssub.s32 %s24, %s36
      %p179 = scmp.eq.s32.totalorder %s178, 0
      %s181 = sadd.s32 %s180, 1
      %s182 = scalar_select %p179, %s180, %s181
      %p185 = pneg %p179
      %p186 = scmp.eq.s32.totalorder %s17, 1
      %p187 = por %p185, %p186
      %p188 = scmp.ne.s32.totalorder %s180, %s183
      %p189 = scmp.eq.s32.totalorder %s17, 0
      %p190 = por %p188, %p189
      %p191 = scmp.ne.s32.totalorder %s180, %s183
      %p192 = scmp.eq.s32.totalorder %s22, 1
      %p193 = por %p191, %p192
      %p194 = scmp.ne.s32.totalorder %s183, %s184
      %p195 = scmp.eq.s32.totalorder %s22, 0
      %p196 = por %p194, %p195
      %p197 = scmp.ne.s32.totalorder %s183, %s184
      %p198 = scmp.eq.s32.totalorder %s23, 1
      %p199 = por %p197, %p198
      %p201 = scmp.ne.s32.totalorder %s184, %s200
      %p202 = scmp.eq.s32.totalorder %s23, 0
      %p203 = por %p201, %p202
      %s204 = ssub.s32 %s24, %s36
      %s205 = ssub.s32 %s25, %s32
      %s206 = sor.u32 %s204, %s205
      %p207 = scmp.eq.s32.totalorder %s206, 0
      %s209 = sadd.s32 %s208, 1
      %s210 = scalar_select %p207, %s208, %s209
      %p213 = pneg %p207
      %p214 = scmp.eq.s32.totalorder %s17, 1
      %p215 = por %p213, %p214
      %p216 = scmp.ne.s32.totalorder %s208, %s211
      %p217 = scmp.eq.s32.totalorder %s17, 0
      %p218 = por %p216, %p217
      %p219 = scmp.ne.s32.totalorder %s208, %s211
      %p220 = scmp.eq.s32.totalorder %s22, 1
      %p221 = por %p219, %p220
      %p222 = scmp.ne.s32.totalorder %s211, %s212
      %p223 = scmp.eq.s32.totalorder %s22, 0
      %p224 = por %p222, %p223
      %p225 = scmp.ne.s32.totalorder %s211, %s212
      %p226 = scmp.eq.s32.totalorder %s23, 1
      %p227 = por %p225, %p226
      %p229 = scmp.ne.s32.totalorder %s212, %s228
      %p230 = scmp.eq.s32.totalorder %s23, 0
      %p231 = por %p229, %p230
      %p232 = scmp.le.s32.totalorder 1, %s17
      %p233 = scmp.lt.s32.totalorder %s17, 3
      %p234 = pnand %p232, %p233
      %p235 = pneg %p234
      // Predicated region
      $region9: #{tpu_custom_call.1} parent=5 // pred_check
        _
      $region10: #{tpu_custom_call.1} parent=5 // pred_check_branch
        %237 = sbr.rel (%p234) target = $region12
      $region11: #{tpu_custom_call.1} parent=5 // pred_region
        %s238 = ssub.s32 %s17, 1
        // Predicated region
        $region13: #{tpu_custom_call.1} parent=11 // pred_check
          %p239 = pneg %p76
        $region14: #{tpu_custom_call.1} parent=11 // pred_check_branch
          %241 = sbr.rel (%p239) target = $region16
        $region15: #{tpu_custom_call.1} parent=11 // pred_region
          %s243 = ssub.s32 3456, 3456
          %244 = vsyncadd [#allocation3], %s243
          %s245 = sshll.u32 [#allocation2], 4
          %s246 = int_to_ptr.vmem [resolvable:$true] %s245
          %251 = dma.hbm_to_vmem [thread:$0]  %s1, 3456, %s246, [#allocation3], 128, 128, 8
        $region16: #{tpu_custom_call.1} parent=11 // pred_fallthru
          _
        // Predicated region
        $region17: #{tpu_custom_call.1} parent=11 // pred_check
          %p252 = pneg %p102
        $region18: #{tpu_custom_call.1} parent=11 // pred_check_branch
          %254 = sbr.rel (%p252) target = $region20
        $region19: #{tpu_custom_call.1} parent=11 // pred_region
          %s255 = smul.u32 2, %s27
          %p256 = scmp.lt.s32.totalorder %s255, 1
          %s257 = scalar_select %p256, %s255, 1
          %s258 = smul.addr %s257, 8
          %s259 = scalar_lea.vmem %s2, %s258
          %s260 = smul.u32 2, %s27
        $region20: #{tpu_custom_call.1} parent=11 // pred_fallthru
          _
        // Predicated region
        $region21: #{tpu_custom_call.1} parent=11 // pred_check
          %p261 = pneg %p149
        $region22: #{tpu_custom_call.1} parent=11 // pred_check_branch
          %263 = sbr.rel (%p261) target = $region24
        $region23: #{tpu_custom_call.1} parent=11 // pred_region
          _
        $region24: #{tpu_custom_call.1} parent=11 // pred_fallthru
          _
        // Predicated region
        $region25: #{tpu_custom_call.1} parent=11 // pred_check
          %p264 = pneg %p170
        $region26: #{tpu_custom_call.1} parent=11 // pred_check_branch
          %266 = sbr.rel (%p264) target = $region28
        $region27: #{tpu_custom_call.1} parent=11 // pred_region
          _
        $region28: #{tpu_custom_call.1} parent=11 // pred_fallthru
          _
      $region12: #{tpu_custom_call.1} parent=5 // pred_fallthru
        _
      %p267 = scmp.lt.s32.totalorder %s17, 2
      // Predicated region
      $region29: #{tpu_custom_call.1} parent=5 // pred_check
        %p268 = pneg %p267
      $region30: #{tpu_custom_call.1} parent=5 // pred_check_branch
        %270 = sbr.rel (%p268) target = $region32
      $region31: #{tpu_custom_call.1} parent=5 // pred_region
        // Predicated region
        $region33: #{tpu_custom_call.1} parent=31 // pred_check
          %p271 = pneg %p49
        $region34: #{tpu_custom_call.1} parent=31 // pred_check_branch
          %273 = sbr.rel (%p271) target = $region36
        $region35: #{tpu_custom_call.1} parent=31 // pred_region
          %p274 = scmp.lt.s32.totalorder %s24, 1
          %s275 = scalar_select %p274, %s24, 1
          %s276 = smul.addr %s275, 3
          %s277 = smul.addr %s276, 8
          %s278 = scalar_lea.vmem %s0, %s277
        $region36: #{tpu_custom_call.1} parent=31 // pred_fallthru
          _
        // Predicated region
        $region37: #{tpu_custom_call.1} parent=31 // pred_check
          %p279 = pneg %p122
        $region38: #{tpu_custom_call.1} parent=31 // pred_check_branch
          %281 = sbr.rel (%p279) target = $region40
        $region39: #{tpu_custom_call.1} parent=31 // pred_region
          %p282 = scmp.lt.s32.totalorder %s24, 1
          %s283 = scalar_select %p282, %s24, 1
          %s284 = smul.addr %s283, 8
          %s285 = scalar_lea.vmem %s3, %s284
        $region40: #{tpu_custom_call.1} parent=31 // pred_fallthru
          _
        // Predicated region
        $region41: #{tpu_custom_call.1} parent=31 // pred_check
          %p286 = pneg %p190
        $region42: #{tpu_custom_call.1} parent=31 // pred_check_branch
          %288 = sbr.rel (%p286) target = $region44
        $region43: #{tpu_custom_call.1} parent=31 // pred_region
          %p289 = scmp.lt.s32.totalorder %s24, 1
          %s290 = scalar_select %p289, %s24, 1
          %s291 = scalar_lea.vmem %s6, %s290
        $region44: #{tpu_custom_call.1} parent=31 // pred_fallthru
          _
      $region32: #{tpu_custom_call.1} parent=5 // pred_fallthru
        _
      %p292 = scmp.le.s32.totalorder 1, %s17
      %p293 = scmp.lt.s32.totalorder %s17, 3
      %p294 = pnand %p292, %p293
      %p295 = pneg %p294
      // Predicated region
      $region45: #{tpu_custom_call.1} parent=5 // pred_check
        _
      $region46: #{tpu_custom_call.1} parent=5 // pred_check_branch
        %297 = sbr.rel (%p294) target = $region48
      $region47: #{tpu_custom_call.1} parent=5 // pred_region
        %s298 = ssub.s32 %s17, 1
        // Predicated region
        $region49: #{tpu_custom_call.1} parent=47 // pred_check
          %p299 = pneg %p76
        $region50: #{tpu_custom_call.1} parent=47 // pred_check_branch
          %301 = sbr.rel (%p299) target = $region52
        $region51: #{tpu_custom_call.1} parent=47 // pred_region
          %302 = dma.done [#allocation3], 3456
        $region52: #{tpu_custom_call.1} parent=47 // pred_fallthru
          _
        %p303 = scmp.lt.s32.totalorder %s26, 1
        %s304 = scalar_select %p303, %s26, 1
        %s305 = smul.addr %s304, 3
        %s306 = smul.addr %s305, 8
        %s307 = scalar_lea.vmem %s0, %s306
        %p308 = pneg %p55
        %p309 = pneg %p52
        %p310 = pneg %p76
        %p311 = pneg %p73
        %s312 = smul.u32 2, %s27
        %p313 = scmp.lt.s32.totalorder %s312, 1
        %s314 = scalar_select %p313, %s312, 1
        %s315 = smul.addr %s314, 8
        %s316 = scalar_lea.vmem %s2, %s315
        %p317 = pneg %p102
        %p318 = pneg %p99
        %p319 = scmp.lt.s32.totalorder %s26, 1
        %s320 = scalar_select %p319, %s26, 1
        %s321 = smul.addr %s320, 8
        %s322 = scalar_lea.vmem %s3, %s321
        %p323 = pneg %p128
        %p324 = pneg %p125
        %p325 = pneg %p149
        %p326 = pneg %p146
        %p327 = pneg %p170
        %p328 = pneg %p167
        %p329 = scmp.lt.s32.totalorder %s26, 1
        %s330 = scalar_select %p329, %s26, 1
        %s331 = scalar_lea.vmem %s6, %s330
        %p332 = pneg %p196
        %p333 = pneg %p193
        %p334 = pneg %p224
        %p335 = pneg %p221
        %s336 = sand.u32 %s211, 1
        %s337 = scalar_lea.sflag [#allocation4], %s336
        %s338 = sand.u32 %s211, 1
        %s339 = smul.addr %s338, 16
        %s340 = scalar_lea.vmem [#allocation5], %s339
        %p341 = scmp.lt.s32.totalorder %s26, 1
        %s342 = scalar_select %p341, %s26, 1
        %s343 = smul.addr %s342, 3
        %s344 = smul.addr %s343, 8
        %s345 = scalar_lea.vmem %s0, %s344
        %s346 = smul.u32 2, %s27
        %p347 = scmp.lt.s32.totalorder %s346, 1
        %s348 = scalar_select %p347, %s346, 1
        %s349 = smul.addr %s348, 8
        %s350 = scalar_lea.vmem %s2, %s349
        %s351 = smul.u32 2, %s27
        %p352 = scmp.lt.s32.totalorder %s26, 1
        %s353 = scalar_select %p352, %s26, 1
        %s354 = smul.addr %s353, 8
        %s355 = scalar_lea.vmem %s3, %s354
        %p356 = scmp.lt.s32.totalorder %s26, 1
        %s357 = scalar_select %p356, %s26, 1
        %s358 = scalar_lea.vmem %s6, %s357
        %s359 = smul.u32 2, %s27
        %s360 = smul.u32 %s27, 16
        %s361 = scalar_lea.vmem %s345, %s360
        %v362 = vld [vmem:[%s361] sm:$0xff]
        %v363 = vld [vmem:[%s361 + $0x8] sm:$0xff]
        %v364 = vld [vmem:[%s361 + $0x10] sm:$0x3]
        %v365 = vld [vmem:[#allocation2] sm:$0xff]
        %v366 = vld [vmem:[#allocation2 + $0x8] sm:$0xff]
        %v367 = vld [vmem:[#allocation2 + $0x10] sm:$0xff]
        %v368 = vld [vmem:[#allocation2 + $0x18] sm:$0xff]
        %v369 = vld [vmem:[#allocation2 + $0x20] sm:$0xff]
        %v370 = vld [vmem:[#allocation2 + $0x28] sm:$0xff]
        %v371 = vld [vmem:[#allocation2 + $0x30] sm:$0xff]
        %v372 = vld [vmem:[#allocation2 + $0x38] sm:$0xff]
        %v373 = vld [vmem:[#allocation2 + $0x40] sm:$0xff]
        %s374 = scalar_lea.vmem [#allocation2], 72
        %v375 = vld [vmem:[%s374] sm:$0xff]
        %v376 = vld [vmem:[%s374 + $0x8] sm:$0xff]
        %v377 = vld [vmem:[%s374 + $0x10] sm:$0xff]
        %v378 = vld [vmem:[%s374 + $0x18] sm:$0xff]
        %v379 = vld [vmem:[%s374 + $0x20] sm:$0xff]
        %v380 = vld [vmem:[%s374 + $0x28] sm:$0xff]
        %v381 = vld [vmem:[%s374 + $0x30] sm:$0xff]
        %v382 = vld [vmem:[%s374 + $0x38] sm:$0xff]
        %v383 = vld [vmem:[%s374 + $0x40] sm:$0xff]
        %vm387 = vcmask 1046528
        %v388 = vrot.slane %v362, 1
        %v389 = vrot.slane %v363, 1
        %v390 = vsel %vm387, %v388, %v389
        %v391 = vrot.slane %v364, 1
        %v392 = vsel %vm387, %v389, %v391
        %vm393 = vcmask 588800
        %v394 = vsel %vm393, %v390, 0
        %v396 = vsel %vm393, %v392, 0
        %398 = vmatprep.subr.mxu0 0.0
        %399 = vmatpush1.msra.mxu0 0.0
        %400 = vmatprep.subr.mxu0 0.0
        %401 = vmatpush1.msra.mxu0 0.0
        %402 = vmatprep.subr.mxu0 0.0
        %403 = vmatpush1.msra.mxu0 0.0
        %404 = vmatprep.subr.mxu0 0.0
        %405 = vmatpush1.msra.mxu0 0.0
        %406 = vmatprep.subr.mxu0 0.0
        %407 = vmatpush1.msra.mxu0 0.0
        %408 = vmatprep.subr.mxu0 0.0
        %409 = vmatpush1.msra.mxu0 0.0
        %410 = vmatprep.subr.mxu0 0.0
        %411 = vmatpush1.msra.mxu0 0.0
        %412 = vmatprep.subr.mxu0 0.0
        %413 = vmatpush1.msra.mxu0 %v383
        %414 = vmatprep.subr.mxu0 0.0
        %415 = vmatpush1.msra.mxu0 %v382
        %416 = vmatprep.subr.mxu0 0.0
        %417 = vmatpush1.msra.mxu0 %v381
        %418 = vmatprep.subr.mxu0 0.0
        %419 = vmatpush1.msra.mxu0 %v380
        %420 = vmatprep.subr.mxu0 0.0
        %421 = vmatpush1.msra.mxu0 %v379
        %422 = vmatprep.subr.mxu0 0.0
        %423 = vmatpush1.msra.mxu0 %v378
        %424 = vmatprep.subr.mxu0 0.0
        %425 = vmatpush1.msra.mxu0 %v377
        %426 = vmatprep.subr.mxu0 0.0
        %427 = vmatpush1.msra.mxu0 %v376
        %428 = vmatprep.subr.mxu0 0.0
        %429 = vmatpush1.msra.mxu0 %v375
        %430 = vmatprep.subr.mxu0 0.0
        %431 = vmatpush2.msra.mxu0 0.0
        %432 = vmatprep.subr.mxu0 0.0
        %433 = vmatpush2.msra.mxu0 0.0
        %434 = vmatprep.subr.mxu0 0.0
        %435 = vmatpush2.msra.mxu0 0.0
        %436 = vmatprep.subr.mxu0 0.0
        %437 = vmatpush2.msra.mxu0 0.0
        %438 = vmatprep.subr.mxu0 0.0
        %439 = vmatpush2.msra.mxu0 0.0
        %440 = vmatprep.subr.mxu0 0.0
        %441 = vmatpush2.msra.mxu0 0.0
        %442 = vmatprep.subr.mxu0 0.0
        %443 = vmatpush2.msra.mxu0 0.0
        %444 = vmatprep.subr.mxu0 0.0
        %445 = vmatpush2.msra.mxu0 0.0
        %446 = vmatprep.subr.mxu0 0.0
        %447 = vmatpush2.msra.mxu0 0.0
        %448 = vmatprep.subr.mxu0 0.0
        %449 = vmatpush2.msra.mxu0 0.0
        %450 = vmatprep.subr.mxu0 0.0
        %451 = vmatpush2.msra.mxu0 0.0
        %452 = vmatprep.subr.mxu0 0.0
        %453 = vmatpush2.msra.mxu0 0.0
        %454 = vmatprep.subr.mxu0 0.0
        %455 = vmatpush2.msra.mxu0 0.0
        %456 = vmatprep.subr.mxu0 0.0
        %457 = vmatpush2.msra.mxu0 0.0
        %458 = vmatprep.subr.mxu0 0.0
        %459 = vmatpush2.msra.mxu0 0.0
        %460 = vmatprep.subr.mxu0 0.0
        %461 = vmatpush2.msra.mxu0 0.0
        %462 = vmatprep.mubr.f32.mxu0 0.0
        %463 = vmatmul.mubr.f32.gmra.mxu0 %v394
        %v464 = vpop.f32.mrf.mxu0
        %v465 = vadd.f32 0.0, %v464
        %v466 = vpop.f32.mrf.mxu0
        %467 = vmatprep.mubr.f32.mxu0 0.0
        %468 = vmatmul.mubr.f32.gmra.mxu0 %v396
        %v469 = vpop.f32.mrf.mxu0
        %v470 = vadd.f32 0.0, %v469
        %v471 = vpop.f32.mrf.mxu0
        %472 = vdwg.mxu0
        %v473 = vsel %vm393, %v362, 0
        %v475 = vsel %vm393, %v363, 0
        %477 = vmatprep.subr.mxu0 0.0
        %478 = vmatpush1.msra.mxu0 0.0
        %479 = vmatprep.subr.mxu0 0.0
        %480 = vmatpush1.msra.mxu0 0.0
        %481 = vmatprep.subr.mxu0 0.0
        %482 = vmatpush1.msra.mxu0 0.0
        %483 = vmatprep.subr.mxu0 0.0
        %484 = vmatpush1.msra.mxu0 0.0
        %485 = vmatprep.subr.mxu0 0.0
        %486 = vmatpush1.msra.mxu0 0.0
        %487 = vmatprep.subr.mxu0 0.0
        %488 = vmatpush1.msra.mxu0 0.0
        %489 = vmatprep.subr.mxu0 0.0
        %490 = vmatpush1.msra.mxu0 0.0
        %491 = vmatprep.subr.mxu0 0.0
        %492 = vmatpush1.msra.mxu0 %v373
        %493 = vmatprep.subr.mxu0 0.0
        %494 = vmatpush1.msra.mxu0 %v372
        %495 = vmatprep.subr.mxu0 0.0
        %496 = vmatpush1.msra.mxu0 %v371
        %497 = vmatprep.subr.mxu0 0.0
        %498 = vmatpush1.msra.mxu0 %v370
        %499 = vmatprep.subr.mxu0 0.0
        %500 = vmatpush1.msra.mxu0 %v369
        %501 = vmatprep.subr.mxu0 0.0
        %502 = vmatpush1.msra.mxu0 %v368
        %503 = vmatprep.subr.mxu0 0.0
        %504 = vmatpush1.msra.mxu0 %v367
        %505 = vmatprep.subr.mxu0 0.0
        %506 = vmatpush1.msra.mxu0 %v366
        %507 = vmatprep.subr.mxu0 0.0
        %508 = vmatpush1.msra.mxu0 %v365
        %509 = vmatprep.subr.mxu0 0.0
        %510 = vmatpush2.msra.mxu0 0.0
        %511 = vmatprep.subr.mxu0 0.0
        %512 = vmatpush2.msra.mxu0 0.0
        %513 = vmatprep.subr.mxu0 0.0
        %514 = vmatpush2.msra.mxu0 0.0
        %515 = vmatprep.subr.mxu0 0.0
        %516 = vmatpush2.msra.mxu0 0.0
        %517 = vmatprep.subr.mxu0 0.0
        %518 = vmatpush2.msra.mxu0 0.0
        %519 = vmatprep.subr.mxu0 0.0
        %520 = vmatpush2.msra.mxu0 0.0
        %521 = vmatprep.subr.mxu0 0.0
        %522 = vmatpush2.msra.mxu0 0.0
        %523 = vmatprep.subr.mxu0 0.0
        %524 = vmatpush2.msra.mxu0 0.0
        %525 = vmatprep.subr.mxu0 0.0
        %526 = vmatpush2.msra.mxu0 0.0
        %527 = vmatprep.subr.mxu0 0.0
        %528 = vmatpush2.msra.mxu0 0.0
        %529 = vmatprep.subr.mxu0 0.0
        %530 = vmatpush2.msra.mxu0 0.0
        %531 = vmatprep.subr.mxu0 0.0
        %532 = vmatpush2.msra.mxu0 0.0
        %533 = vmatprep.subr.mxu0 0.0
        %534 = vmatpush2.msra.mxu0 0.0
        %535 = vmatprep.subr.mxu0 0.0
        %536 = vmatpush2.msra.mxu0 0.0
        %537 = vmatprep.subr.mxu0 0.0
        %538 = vmatpush2.msra.mxu0 0.0
        %539 = vmatprep.subr.mxu0 0.0
        %540 = vmatpush2.msra.mxu0 0.0
        %541 = vmatprep.mubr.f32.mxu0 0.0
        %542 = vmatmul.mubr.f32.gmra.mxu0 %v473
        %v543 = vpop.f32.mrf.mxu0
        %v544 = vadd.f32 %v465, %v543
        %v545 = vpop.f32.mrf.mxu0
        %546 = vmatprep.mubr.f32.mxu0 0.0
        %547 = vmatmul.mubr.f32.gmra.mxu0 %v475
        %v548 = vpop.f32.mrf.mxu0
        %v549 = vadd.f32 %v470, %v548
        %v550 = vpop.f32.mrf.mxu0
        %551 = vdwg.mxu0
        %s552 = scalar_lea.vmem [#allocation2], 144
        %v553 = vld [vmem:[%s552] sm:$0xff]
        %v554 = vld [vmem:[%s552 + $0x8] sm:$0xff]
        %v555 = vld [vmem:[%s552 + $0x10] sm:$0xff]
        %v556 = vld [vmem:[%s552 + $0x18] sm:$0xff]
        %v557 = vld [vmem:[%s552 + $0x20] sm:$0xff]
        %v558 = vld [vmem:[%s552 + $0x28] sm:$0xff]
        %v559 = vld [vmem:[%s552 + $0x30] sm:$0xff]
        %v560 = vld [vmem:[%s552 + $0x38] sm:$0xff]
        %v561 = vld [vmem:[%s552 + $0x40] sm:$0xff]
        %vm562 = vcmask 1045504
        %v563 = vrot.slane %v362, 2
        %v564 = vrot.slane %v363, 2
        %v565 = vsel %vm562, %v563, %v564
        %v566 = vrot.slane %v364, 2
        %v567 = vsel %vm562, %v564, %v566
        %v568 = vsel %vm393, %v565, 0
        %v570 = vsel %vm393, %v567, 0
        %572 = vmatprep.subr.mxu0 0.0
        %573 = vmatpush1.msra.mxu0 0.0
        %574 = vmatprep.subr.mxu0 0.0
        %575 = vmatpush1.msra.mxu0 0.0
        %576 = vmatprep.subr.mxu0 0.0
        %577 = vmatpush1.msra.mxu0 0.0
        %578 = vmatprep.subr.mxu0 0.0
        %579 = vmatpush1.msra.mxu0 0.0
        %580 = vmatprep.subr.mxu0 0.0
        %581 = vmatpush1.msra.mxu0 0.0
        %582 = vmatprep.subr.mxu0 0.0
        %583 = vmatpush1.msra.mxu0 0.0
        %584 = vmatprep.subr.mxu0 0.0
        %585 = vmatpush1.msra.mxu0 0.0
        %586 = vmatprep.subr.mxu0 0.0
        %587 = vmatpush1.msra.mxu0 %v561
        %588 = vmatprep.subr.mxu0 0.0
        %589 = vmatpush1.msra.mxu0 %v560
        %590 = vmatprep.subr.mxu0 0.0
        %591 = vmatpush1.msra.mxu0 %v559
        %592 = vmatprep.subr.mxu0 0.0
        %593 = vmatpush1.msra.mxu0 %v558
        %594 = vmatprep.subr.mxu0 0.0
        %595 = vmatpush1.msra.mxu0 %v557
        %596 = vmatprep.subr.mxu0 0.0
        %597 = vmatpush1.msra.mxu0 %v556
        %598 = vmatprep.subr.mxu0 0.0
        %599 = vmatpush1.msra.mxu0 %v555
        %600 = vmatprep.subr.mxu0 0.0
        %601 = vmatpush1.msra.mxu0 %v554
        %602 = vmatprep.subr.mxu0 0.0
        %603 = vmatpush1.msra.mxu0 %v553
        %604 = vmatprep.subr.mxu0 0.0
        %605 = vmatpush2.msra.mxu0 0.0
        %606 = vmatprep.subr.mxu0 0.0
        %607 = vmatpush2.msra.mxu0 0.0
        %608 = vmatprep.subr.mxu0 0.0
        %609 = vmatpush2.msra.mxu0 0.0
        %610 = vmatprep.subr.mxu0 0.0
        %611 = vmatpush2.msra.mxu0 0.0
        %612 = vmatprep.subr.mxu0 0.0
        %613 = vmatpush2.msra.mxu0 0.0
        %614 = vmatprep.subr.mxu0 0.0
        %615 = vmatpush2.msra.mxu0 0.0
        %616 = vmatprep.subr.mxu0 0.0
        %617 = vmatpush2.msra.mxu0 0.0
        %618 = vmatprep.subr.mxu0 0.0
        %619 = vmatpush2.msra.mxu0 0.0
        %620 = vmatprep.subr.mxu0 0.0
        %621 = vmatpush2.msra.mxu0 0.0
        %622 = vmatprep.subr.mxu0 0.0
        %623 = vmatpush2.msra.mxu0 0.0
        %624 = vmatprep.subr.mxu0 0.0
        %625 = vmatpush2.msra.mxu0 0.0
        %626 = vmatprep.subr.mxu0 0.0
        %627 = vmatpush2.msra.mxu0 0.0
        %628 = vmatprep.subr.mxu0 0.0
        %629 = vmatpush2.msra.mxu0 0.0
        %630 = vmatprep.subr.mxu0 0.0
        %631 = vmatpush2.msra.mxu0 0.0
        %632 = vmatprep.subr.mxu0 0.0
        %633 = vmatpush2.msra.mxu0 0.0
        %634 = vmatprep.subr.mxu0 0.0
        %635 = vmatpush2.msra.mxu0 0.0
        %636 = vmatprep.mubr.f32.mxu0 0.0
        %637 = vmatmul.mubr.f32.gmra.mxu0 %v568
        %v638 = vpop.f32.mrf.mxu0
        %v639 = vadd.f32 0.0, %v638
        %v640 = vpop.f32.mrf.mxu0
        %641 = vmatprep.mubr.f32.mxu0 0.0
        %642 = vmatmul.mubr.f32.gmra.mxu0 %v570
        %v643 = vpop.f32.mrf.mxu0
        %v644 = vadd.f32 0.0, %v643
        %v645 = vpop.f32.mrf.mxu0
        %646 = vdwg.mxu0
        %v647 = vadd.f32 %v544, %v639
        %v648 = vadd.f32 %v549, %v644
        %v649 = vld [vmem:[%s4] sm:$0x1]
        %v651 = vlaneseq
        %v652 = vshrl.u32 %v651, 7
        %v653 = vsub.s32 0, %v652
        %v654 = vrot.slane %v649, %v653
        %v656 = vmul.f32 %v647, %v654
        %v657 = vmul.f32 %v648, %v654
        %v658 = vld [vmem:[%s5] sm:$0x1]
        %v660 = vlaneseq
        %v661 = vshrl.u32 %v660, 7
        %v662 = vsub.s32 0, %v661
        %v663 = vrot.slane %v658, %v662
        %v665 = vadd.f32 %v656, %v663
        %v666 = vadd.f32 %v657, %v663
        %v667 = vmax.f32 %v665, 0.0
        %v668 = vmax.f32 %v666, 0.0
        %v669 = vld [vmem:[%s358] sm:$0x1]
        %v671 = vlaneseq
        %v672 = vshrl.u32 %v671, 7
        %v673 = vsub.s32 0, %v672
        %v674 = vrot.slane %v669, %v673
        %v676 = vmul.f32 %v667, %v674
        %v677 = vmul.f32 %v668, %v674
        %v678 = vld [vmem:[%s350] sm:$0xff]
        %v679 = vld [vmem:[%s350 + $0x8] sm:$0xff]
        %v680 = vld [vmem:[%s355] sm:$0xff]
        %vm681 = vcmask 64512
        %v683 = vsel %vm681, %v678, 0
        %v686 = vsel %vm681, %v679, 0
        %688 = vmatprep.subr.mxu0 0.0
        %689 = vmatpush1.msra.mxu0 0.0
        %690 = vmatprep.subr.mxu0 0.0
        %691 = vmatpush1.msra.mxu0 0.0
        %692 = vmatprep.subr.mxu0 0.0
        %693 = vmatpush1.msra.mxu0 0.0
        %694 = vmatprep.subr.mxu0 0.0
        %695 = vmatpush1.msra.mxu0 0.0
        %696 = vmatprep.subr.mxu0 0.0
        %697 = vmatpush1.msra.mxu0 0.0
        %698 = vmatprep.subr.mxu0 0.0
        %699 = vmatpush1.msra.mxu0 0.0
        %700 = vmatprep.subr.mxu0 0.0
        %701 = vmatpush1.msra.mxu0 0.0
        %702 = vmatprep.subr.mxu0 0.0
        %703 = vmatpush1.msra.mxu0 0.0
        %704 = vmatprep.subr.mxu0 0.0
        %705 = vmatpush1.msra.mxu0 0.0
        %706 = vmatprep.subr.mxu0 0.0
        %707 = vmatpush1.msra.mxu0 0.0
        %708 = vmatprep.subr.mxu0 0.0
        %709 = vmatpush1.msra.mxu0 0.0
        %710 = vmatprep.subr.mxu0 0.0
        %711 = vmatpush1.msra.mxu0 0.0
        %712 = vmatprep.subr.mxu0 0.0
        %713 = vmatpush1.msra.mxu0 0.0
        %714 = vmatprep.subr.mxu0 0.0
        %715 = vmatpush1.msra.mxu0 0.0
        %716 = vmatprep.subr.mxu0 0.0
        %717 = vmatpush1.msra.mxu0 0.0
        %718 = vmatprep.subr.mxu0 0.0
        %719 = vmatpush1.msra.mxu0 %v680
        %720 = vmatprep.subr.mxu0 0.0
        %721 = vmatpush2.msra.mxu0 0.0
        %722 = vmatprep.subr.mxu0 0.0
        %723 = vmatpush2.msra.mxu0 0.0
        %724 = vmatprep.subr.mxu0 0.0
        %725 = vmatpush2.msra.mxu0 0.0
        %726 = vmatprep.subr.mxu0 0.0
        %727 = vmatpush2.msra.mxu0 0.0
        %728 = vmatprep.subr.mxu0 0.0
        %729 = vmatpush2.msra.mxu0 0.0
        %730 = vmatprep.subr.mxu0 0.0
        %731 = vmatpush2.msra.mxu0 0.0
        %732 = vmatprep.subr.mxu0 0.0
        %733 = vmatpush2.msra.mxu0 0.0
        %734 = vmatprep.subr.mxu0 0.0
        %735 = vmatpush2.msra.mxu0 0.0
        %736 = vmatprep.subr.mxu0 0.0
        %737 = vmatpush2.msra.mxu0 0.0
        %738 = vmatprep.subr.mxu0 0.0
        %739 = vmatpush2.msra.mxu0 0.0
        %740 = vmatprep.subr.mxu0 0.0
        %741 = vmatpush2.msra.mxu0 0.0
        %742 = vmatprep.subr.mxu0 0.0
        %743 = vmatpush2.msra.mxu0 0.0
        %744 = vmatprep.subr.mxu0 0.0
        %745 = vmatpush2.msra.mxu0 0.0
        %746 = vmatprep.subr.mxu0 0.0
        %747 = vmatpush2.msra.mxu0 0.0
        %748 = vmatprep.subr.mxu0 0.0
        %749 = vmatpush2.msra.mxu0 0.0
        %750 = vmatprep.subr.mxu0 0.0
        %751 = vmatpush2.msra.mxu0 0.0
        %752 = vmatprep.mubr.f32.mxu0 0.0
        %753 = vmatmul.mubr.f32.gmra.mxu0 %v683
        %v754 = vpop.f32.mrf.mxu0
        %v755 = vadd.f32 %v676, %v754
        %v756 = vpop.f32.mrf.mxu0
        %757 = vmatprep.mubr.f32.mxu0 0.0
        %758 = vmatmul.mubr.f32.gmra.mxu0 %v686
        %v759 = vpop.f32.mrf.mxu0
        %v760 = vadd.f32 %v677, %v759
        %v761 = vpop.f32.mrf.mxu0
        %762 = vdwg.mxu0
        %763 = vst [vmem:[%s340] sm:$0xff] %v755
        %764 = vst [vmem:[%s340 + $0x8] sm:$0xff] %v760
        %s765 = sand.u32 %s211, 1
        %s766 = scalar_lea.sflag [#allocation4], %s765
        %s767 = sand.u32 %s211, 1
        %s768 = smul.addr %s767, 16
        %s769 = scalar_lea.vmem [#allocation5], %s768
        // Predicated region
        $region53: #{tpu_custom_call.1} parent=47 // pred_check
          %p770 = pneg %p221
        $region54: #{tpu_custom_call.1} parent=47 // pred_check_branch
          %772 = sbr.rel (%p770) target = $region56
        $region55: #{tpu_custom_call.1} parent=47 // pred_region
          %s773 = smul.u32 2, %s27
          %s775 = ssub.s32 256, 256
          %776 = vsyncadd %s766, %s775
          %s777 = smul.addr %s26, 2
          %s778 = sadd.s32 %s773, %s777
          %s779 = smul.addr %s778, 128
          %s780 = scalar_lea.hbm %s7, %s779
          %s781 = sshll.u32 %s769, 4
          %s782 = int_to_ptr.vmem [resolvable:$true] %s781
          %787 = dma.vmem_to_hbm [thread:$0]  %s782, 256, %s780, %s766, 128, 128, 8
        $region56: #{tpu_custom_call.1} parent=47 // pred_fallthru
          _
      $region48: #{tpu_custom_call.1} parent=5 // pred_fallthru
        _
      %p788 = scmp.le.s32.totalorder 2, %s17
      // Predicated region
      $region57: #{tpu_custom_call.1} parent=5 // pred_check
        %p789 = pneg %p788
      $region58: #{tpu_custom_call.1} parent=5 // pred_check_branch
        %791 = sbr.rel (%p789) target = $region60
      $region59: #{tpu_custom_call.1} parent=5 // pred_region
        %s792 = ssub.s32 %s17, 2
        // Predicated region
        $region61: #{tpu_custom_call.1} parent=59 // pred_check
          %p793 = pneg %p227
        $region62: #{tpu_custom_call.1} parent=59 // pred_check_branch
          %795 = sbr.rel (%p793) target = $region64
        $region63: #{tpu_custom_call.1} parent=59 // pred_region
          %s796 = sand.u32 %s212, 1
          %s797 = scalar_lea.sflag [#allocation4], %s796
          %s798 = sand.u32 %s212, 1
          %s799 = smul.addr %s798, 16
          %s800 = scalar_lea.vmem [#allocation5], %s799
          %801 = dma.done %s797, 256
        $region64: #{tpu_custom_call.1} parent=59 // pred_fallthru
          _
      $region60: #{tpu_custom_call.1} parent=5 // pred_fallthru
        _
    $region6: #{tpu_custom_call.1} parent=1 // loop_footer
      %s21 = sadd.s32 1, %s17
    $region7: #{tpu_custom_call.1} parent=1 // loop_footer_branch
      %16 = sbr.rel target = $region3
    $region8: #{tpu_custom_call.1} parent=1 // loop_exit
      _
    %802 = vsyncpa [#allocation3], 1
    %s803 = scalar_lea.sflag [#allocation3], 1
    %804 = vsyncpa %s803, 1
    %805 = vsyncpa [#allocation4], 1
    %s806 = scalar_lea.sflag [#allocation4], 1
    %807 = vsyncpa %s806, 1

</llo_original>
